<compile_context>
chip_gen: v6e
topology: v6e:2x2x1
jax: 0.10.0
libtpu: 0.0.40
codegen_flags: <defaults>
</compile_context>

<pallas_src>
import jax
import jax.numpy as jnp
from jax.experimental import pallas as pl
from jax.experimental.pallas import tpu as pltpu


_LANE = 1024      # lane (last) dim of the flattened slab; multiple of 128
_TM_MAX = 512     # max row tile; multiple of 8; (512, 1024) f32 = 2 MiB/tile


def _crrelu_kernel(lr_ref, x_ref, o_ref):
    # lr_ref: (1, 1) scalar in SMEM ; x_ref/o_ref: (tm, LANE) tile in VMEM
    x = x_ref[...].astype(jnp.float32)
    lr = lr_ref[0, 0]
    relu = jnp.maximum(x, 0.0)
    gauss = jnp.exp(x * x * -0.5)          # EUP transcendental
    o_ref[...] = (relu + lr * x * gauss).astype(o_ref.dtype)


def crrelu(x: jax.Array, lr: jax.Array) -> jax.Array:
    """CRReLU forward. x: any shape (e.g. NCHW), lr: scalar parameter."""
    orig_shape = x.shape
    orig_dtype = x.dtype
    total = x.size
    if total == 0:
        return x

    # Flatten to a lane-dense 2D slab (rows, _LANE), zero-padding the tail.
    lane = _LANE
    pad = (-total) % lane
    x_flat = x.reshape(-1)
    if pad:
        x_flat = jnp.pad(x_flat, (0, pad))
    rows = (total + pad) // lane
    x2d = x_flat.reshape(rows, lane)

    # Row tile: multiple of 8 when tiling, or the full row extent if small.
    tm = _TM_MAX if rows >= _TM_MAX else rows
    grid = (pl.cdiv(rows, tm),)

    lr2d = jnp.asarray(lr, dtype=jnp.float32).reshape(1, 1)

    n = x2d.size
    cost = pl.CostEstimate(
        flops=4 * n,
        transcendentals=n,
        bytes_accessed=2 * n * x2d.dtype.itemsize,
    )

    out = pl.pallas_call(
        _crrelu_kernel,
        out_shape=jax.ShapeDtypeStruct(x2d.shape, orig_dtype),
        grid=grid,
        in_specs=[
            pl.BlockSpec(memory_space=pltpu.SMEM),            # lr scalar
            pl.BlockSpec((tm, lane), lambda i: (i, 0)),       # row tile
        ],
        out_specs=pl.BlockSpec((tm, lane), lambda i: (i, 0)),
        compiler_params=pltpu.CompilerParams(
            dimension_semantics=("parallel",),                # megacore-friendly
        ),
        cost_estimate=cost,
    )(lr2d, x2d)

    out_flat = out.reshape(-1)
    if pad:
        out_flat = out_flat[:total]
    return out_flat.reshape(orig_shape)


def crrelu_ref(x, lr):
    xf = x.astype(jnp.float32)
    return (jnp.maximum(xf, 0.0) + lr * xf * jnp.exp(-(xf ** 2) / 2.0)).astype(x.dtype)


if __name__ == "__main__":
    key = jax.random.PRNGKey(0)
    lr = jnp.float32(-0.4)  # deterministic init, matches nn.Parameter(torch.tensor(-0.4))

    # NCHW input, small shape, f32
    x = jax.random.normal(key, (2, 4, 16, 16), dtype=jnp.float32)
    y = crrelu(x, lr)
    jax.block_until_ready(y)
    y_ref = crrelu_ref(x, lr)
    assert y.shape == x.shape and y.dtype == x.dtype
    assert jnp.allclose(y, y_ref, atol=1e-5, rtol=1e-5), "f32 mismatch vs reference"

    # bf16 input with awkward (non-lane-aligned) shape exercises pad path + dtype cast
    xb = jax.random.normal(jax.random.PRNGKey(1), (2, 3, 7, 13), dtype=jnp.bfloat16)
    yb = crrelu(xb, lr)
    jax.block_until_ready(yb)
    yb_ref = crrelu_ref(xb, lr)
    assert yb.shape == xb.shape and yb.dtype == xb.dtype
    assert jnp.allclose(yb.astype(jnp.float32), yb_ref.astype(jnp.float32),
                        atol=2e-2, rtol=2e-2), "bf16 mismatch vs reference"

    print("KERNEL_OK")
</pallas_src>

<mosaic_0001>
module attributes {stable_mosaic.version = 11 : i64} {
  func.func @_crrelu_kernel(%arg0: i32, %arg1: memref<1x1xf32, #tpu.memory_space<smem>>, %arg2: memref<2x1024xf32, #tpu.memory_space<vmem>>, %arg3: memref<2x1024xf32, #tpu.memory_space<vmem>>) attributes {dimension_semantics = [#tpu.dimension_semantics<parallel>], iteration_bounds = array<i64: 1>, scalar_prefetch = 0 : i64, scratch_operands = 0 : i64, tpu.core_type = #tpu.core_type<tc>, window_params = [{transform_indices = @transform_0, window_bounds = array<i64: 1, 1>}, {transform_indices = @transform_1, window_bounds = array<i64: 2, 1024>}, {transform_indices = @transform_2, window_bounds = array<i64: 2, 1024>}]} {
    %c0 = arith.constant 0 : index
    %c0_0 = arith.constant 0 : index
    %0 = vector.load %arg2[%c0, %c0_0] : memref<2x1024xf32, #tpu.memory_space<vmem>>, vector<2x1024xf32>
    %c0_1 = arith.constant 0 : index
    %c0_2 = arith.constant 0 : index
    %1 = memref.load %arg1[%c0_1, %c0_2] : memref<1x1xf32, #tpu.memory_space<smem>>
    %cst = arith.constant 0.000000e+00 : f32
    %2 = vector.broadcast %cst : f32 to vector<2x1024xf32>
    %3 = arith.maximumf %0, %2 : vector<2x1024xf32>
    %4 = arith.mulf %0, %0 : vector<2x1024xf32>
    %cst_3 = arith.constant -5.000000e-01 : f32
    %5 = vector.broadcast %cst_3 : f32 to vector<2x1024xf32>
    %6 = arith.mulf %4, %5 : vector<2x1024xf32>
    %7 = math.exp %6 : vector<2x1024xf32>
    %8 = vector.broadcast %1 : f32 to vector<2x1024xf32>
    %9 = arith.mulf %8, %0 : vector<2x1024xf32>
    %10 = arith.mulf %9, %7 : vector<2x1024xf32>
    %11 = arith.addf %3, %10 : vector<2x1024xf32>
    %c0_4 = arith.constant 0 : index
    %c0_5 = arith.constant 0 : index
    %12 = vector.load %arg3[%c0_4, %c0_5] : memref<2x1024xf32, #tpu.memory_space<vmem>>, vector<2x1024xf32>
    tpu.vector_store %arg3[%c0_4, %c0_5], %11 {strides = array<i32>} : memref<2x1024xf32, #tpu.memory_space<vmem>>, vector<2x1024xf32>,
    return
  }
  func.func @transform_0(%arg0: i32) -> (i32, i32) {
    %c0_i32 = arith.constant 0 : i32
    %c0_i32_0 = arith.constant 0 : i32
    %c0_i32_1 = arith.constant 0 : i32
    return %c0_i32, %c0_i32_0 : i32, i32
  }
  func.func @transform_1(%arg0: i32) -> (i32, i32) {
    %c0_i32 = arith.constant 0 : i32
    %c0_i32_0 = arith.constant 0 : i32
    return %arg0, %c0_i32 : i32, i32
  }
  func.func @transform_2(%arg0: i32) -> (i32, i32) {
    %c0_i32 = arith.constant 0 : i32
    %c0_i32_0 = arith.constant 0 : i32
    return %arg0, %c0_i32 : i32, i32
  }
}

</mosaic_0001>

<llo_original>
// kernel: tpu_custom_call.1
$region0: #{tpu_custom_call.1}
  #allocation0 [shape = 'u32[]', space=smem, size = 0x4, offset = 0x4, fixed_abs, tag = 'smem constant byte address 0x4 - core index']
  #allocation1 [shape = 'u32[144,128]{1,0:T(1,128)}', space=vmem, size = 0x12000, scoped, tag = 'internal scratch']
  #allocation2 [shape = 'f32[1,1]{1,0:T(1,128)S(6)}', space=smem, size = 0x200, scoped, tag = 'scoped memory for tpu_custom_call.1']
  %s0 = inlined_call_operand.<no memory space> [shape: f32[1,1], index: 0, kind: input, shape index: {}]
  %s1 = inlined_call_operand.hbm [shape: f32[2,1024], index: 1, kind: input, shape index: {}]
  %s2 = inlined_call_operand.hbm [shape: f32[2,1024], index: 2, kind: output, shape index: {}]
  %s3 = sld [smem:[#allocation0]]
  $region22: #{tpu_custom_call.1} parent=0
    _
  %s5 = ssub.s32 1, %s3
  %s6 = scalar_select 0, %s5, %s3
  %7 = sst [smem:[#allocation2]] %s0
  $region1: #{tpu_custom_call.1} parent=0
    #allocation3 [shape = 'u8[8192]{0}', space=vmem, size = 0x2000, scoped, tag = 'input window, operand 1, single buffered']
    #allocation4 [shape = 's32[1]{0}', space=sflag, size = 0x4, scoped, tag = 'scoped memory for tpu_custom_call.1']
    #allocation5 [shape = 's32[1]{0}', space=sflag, size = 0x4, scoped, tag = 'scoped memory for tpu_custom_call.1']
    #allocation6 [shape = 'u8[8192]{0}', space=vmem, size = 0x2000, scoped, tag = 'output window, operand 0, single buffered']
    %8 = vsyncpa [#allocation4], 0
    %9 = vsyncpa [#allocation5], 0
    // Predicated region
    $region2: #{tpu_custom_call.1} parent=1 // pred_check
      _
    $region3: #{tpu_custom_call.1} parent=1 // pred_check_branch
      %11 = sbr.rel (0) target = $region5
    $region4: #{tpu_custom_call.1} parent=1 // pred_region
      _
    $region5: #{tpu_custom_call.1} parent=1 // pred_fallthru
      _
    // Predicated region
    $region6: #{tpu_custom_call.1} parent=1 // pred_check
      _
    $region7: #{tpu_custom_call.1} parent=1 // pred_check_branch
      %13 = sbr.rel (0) target = $region9
    $region8: #{tpu_custom_call.1} parent=1 // pred_region
      %s15 = ssub.s32 256, 256
      %16 = vsyncadd [#allocation4], %s15
      %s18 = sshll.u32 [#allocation3], 4
      %s19 = int_to_ptr.vmem [resolvable:$true] %s18
      %21 = dma.hbm_to_vmem [thread:$0]  %s1, 256, %s19, [#allocation4]
    $region9: #{tpu_custom_call.1} parent=1 // pred_fallthru
      _
    // Predicated region
    $region10: #{tpu_custom_call.1} parent=1 // pred_check
      _
    $region11: #{tpu_custom_call.1} parent=1 // pred_check_branch
      %23 = sbr.rel (0) target = $region13
    $region12: #{tpu_custom_call.1} parent=1 // pred_region
      %24 = dma.done [#allocation4], 256
    $region13: #{tpu_custom_call.1} parent=1 // pred_fallthru
      _
    %v25 = vld [vmem:[#allocation3] sm:$0xff]
    %v26 = vld [vmem:[#allocation3 + $0x8] sm:$0xff]
    %s27 = sld [smem:[#allocation2]]
    %v28 = vmax.f32 %v25, 0.0
    %v29 = vmax.f32 %v26, 0.0
    %v30 = vmul.f32 %v25, %v25
    %v31 = vmul.f32 %v26, %v26
    %v32 = vmul.f32 %v30, -0.5
    %v33 = vmul.f32 %v31, -0.5
    %v34 = vmul.f32 %v32, 1.442695
    %v35 = vpow.pop %v34
    %v36 = vmul.f32 %v33, 1.442695
    %v37 = vpow.pop %v36
    %v38 = vstv %s27
    %v39 = vmul.f32 %v38, %v25
    %v40 = vmul.f32 %v38, %v26
    %v41 = vmul.f32 %v39, %v35
    %v42 = vmul.f32 %v40, %v37
    %v43 = vadd.f32 %v28, %v41
    %v44 = vadd.f32 %v29, %v42
    %45 = vst [vmem:[#allocation6] sm:$0xff] %v43
    %46 = vst [vmem:[#allocation6 + $0x8] sm:$0xff] %v44
    // Predicated region
    $region14: #{tpu_custom_call.1} parent=1 // pred_check
      _
    $region15: #{tpu_custom_call.1} parent=1 // pred_check_branch
      %48 = sbr.rel (0) target = $region17
    $region16: #{tpu_custom_call.1} parent=1 // pred_region
      %s50 = ssub.s32 256, 256
      %51 = vsyncadd [#allocation5], %s50
      %s53 = sshll.u32 [#allocation6], 4
      %s54 = int_to_ptr.vmem [resolvable:$true] %s53
      %56 = dma.vmem_to_hbm [thread:$0]  %s54, 256, %s2, [#allocation5]
    $region17: #{tpu_custom_call.1} parent=1 // pred_fallthru
      _
    // Predicated region
    $region18: #{tpu_custom_call.1} parent=1 // pred_check
      _
    $region19: #{tpu_custom_call.1} parent=1 // pred_check_branch
      %58 = sbr.rel (0) target = $region21
    $region20: #{tpu_custom_call.1} parent=1 // pred_region
      %59 = dma.done [#allocation5], 256
    $region21: #{tpu_custom_call.1} parent=1 // pred_fallthru
      _
    %60 = vsyncpa [#allocation4], 1
    %61 = vsyncpa [#allocation5], 1

</llo_original>
